<compile_context>
chip_gen: v7x
topology: tpu7x:2x2x1
jax: 0.10.0
libtpu: 0.0.40
codegen_flags: <defaults>
</compile_context>

<pallas_src>
import functools
import math

import jax
import jax.numpy as jnp
from jax.experimental import pallas as pl
from jax.experimental.pallas import tpu as pltpu


# ----------------------------- Pallas kernel ------------------------------ #
def _mha_kernel(*refs, num_heads, head_size, batch_block, seq_len, emb_size,
                shared_qkv, has_mask, compute_dtype):
    if has_mask:
        x_ref, w_ref, b_ref, mbias_ref, o_ref = refs
    else:
        x_ref, w_ref, b_ref, o_ref = refs
        mbias_ref = None

    tb, s, h, d, e = batch_block, seq_len, num_heads, head_size, emb_size
    f32 = jnp.float32

    # --- fused projections (1/sqrt(d) already folded into the Wq columns) ---
    if shared_qkv:
        # one (tb*S, E) x (E, 3E) matmul covers q, k and v
        y = jnp.dot(x_ref[...], w_ref[...],
                    preferred_element_type=f32) + b_ref[...]        # (tb*S, 3E)
        yq, yk, yv = y, y, y
        offs = (0, e, 2 * e)
    else:
        # distinct q/k/v: one leading-batch einsum (3, tb*S, E) x (3, E, E)
        y3 = jnp.einsum('nme,nef->nmf', x_ref[...], w_ref[...],
                        preferred_element_type=f32) + b_ref[...]    # (3, tb*S, E)
        yq, yk, yv = y3[0], y3[1], y3[2]
        offs = (0, 0, 0)

    # --- heads -> batch dim: (tb*S, cols) -> (H*tb, S, d), n = head*tb + b ---
    def split_heads(y2, base):
        parts = [y2[:, base + i * d: base + (i + 1) * d].reshape(tb, s, d)
                 for i in range(h)]
        return jnp.concatenate(parts, axis=0).astype(compute_dtype)

    q3 = split_heads(yq, offs[0])
    k3 = split_heads(yk, offs[1])
    v3 = split_heads(yv, offs[2])

    # --- scaled dot-product attention, batched over (head, batch) ---
    scores = jnp.einsum('nqd,nkd->nqk', q3, k3,
                        preferred_element_type=f32)                 # (H*tb, S, S)

    if has_mask:
        # additive mask bias, broadcast over heads via a free leading reshape
        mb = mbias_ref[...].astype(f32)                             # (tb, S, S)
        scores = (scores.reshape(h, tb, s, s) + mb[None]).reshape(h * tb, s, s)

    # numerically-stable softmax; EUP reciprocal for the normalization
    scores = scores - jnp.max(scores, axis=-1, keepdims=True)
    ex = jnp.exp(scores)
    p = ex * pl.reciprocal(jnp.sum(ex, axis=-1, keepdims=True), approx=True)

    out3 = jnp.einsum('nqk,nkd->nqd', p.astype(compute_dtype), v3,
                      preferred_element_type=f32)                   # (H*tb, S, d)

    # --- merge heads back onto lanes; single dense (tb*S, E) store ---
    out = jnp.concatenate([out3[i * tb:(i + 1) * tb] for i in range(h)],
                          axis=-1)                                  # (tb, S, E)
    o_ref[...] = out.reshape(tb * s, e).astype(o_ref.dtype)


# ------------------------------- wrapper ----------------------------------- #
def _vmem_capacity_bytes():
    """Physical per-core VMEM; conservative 64 MiB (v7x) fallback."""
    try:
        return int(pltpu.get_tpu_info().vmem_capacity_bytes)
    except Exception:
        return 64 << 20


def _pick_batch_block(batch, seq, emb, heads, itemsize, vmem_cap):
    """Largest divisor TB of `batch` whose live block data fits a
    generation-aware budget, keeps (TB*S, E) sublane-aligned, and (when
    possible) leaves >=2 grid steps so both v7x TensorCores get work."""
    per_batch = (seq * emb * (8 * itemsize + 24)          # x / proj / out slabs
                 + (16 * heads + 4) * seq * seq)          # scores/exp/probs + mask
    budget = max(1 << 20, min(24 << 20, vmem_cap // 3))
    cap = max(1, budget // max(per_batch, 1))
    candidates = [tb for tb in range(1, batch + 1)
                  if batch % tb == 0 and ((tb * seq) % 8 == 0 or tb == batch)]
    fitting = [tb for tb in candidates if tb <= cap]
    if not fitting:
        return min(candidates)
    multi = [tb for tb in fitting if batch // tb >= 2]
    return max(multi) if multi else max(fitting)


def multi_headed_attention(query, key, value, params, *, num_heads, mask=None,
                           batch_block=None, use_bf16=True):
    """encode_pos=False forward of MultiHeadedAttention (eval-mode dropout)."""
    B, S, E = query.shape
    assert key.shape == (B, S, E) and value.shape == (B, S, E)
    assert E % num_heads == 0
    d = E // num_heads
    wq, bq, wk, bk, wv, bv = params

    in_dtype = jnp.bfloat16 if use_bf16 else jnp.float32
    compute_dtype = in_dtype
    scale = 1.0 / math.sqrt(d)

    # nn.Linear weights are (out, in): pre-transpose ONCE; fold 1/sqrt(d) into
    # the query projection weight + bias so the kernel never scales scores.
    wq_t = (wq.T * scale).astype(in_dtype)
    wk_t = wk.T.astype(in_dtype)
    wv_t = wv.T.astype(in_dtype)
    bq_s = (bq * scale).astype(jnp.float32)
    bk_f = bk.astype(jnp.float32)
    bv_f = bv.astype(jnp.float32)

    shared_qkv = (query is key) and (key is value)

    q2 = query.reshape(B * S, E).astype(in_dtype)
    if shared_qkv:
        x_arg = q2                                                  # (B*S, E)
        w_arg = jnp.concatenate([wq_t, wk_t, wv_t], axis=1)        # (E, 3E)
        b_arg = jnp.concatenate([bq_s, bk_f, bv_f]).reshape(1, 3 * E)
    else:
        k2 = key.reshape(B * S, E).astype(in_dtype)
        v2 = value.reshape(B * S, E).astype(in_dtype)
        x_arg = jnp.stack([q2, k2, v2])                             # (3, B*S, E)
        w_arg = jnp.stack([wq_t, wk_t, wv_t])                       # (3, E, E)
        b_arg = jnp.stack([bq_s, bk_f, bv_f]).reshape(3, 1, E)

    vmem_cap = _vmem_capacity_bytes()
    itemsize = jnp.dtype(in_dtype).itemsize
    if batch_block is None:
        batch_block = _pick_batch_block(B, S, E, num_heads, itemsize, vmem_cap)
    assert B % batch_block == 0
    assert (batch_block * S) % 8 == 0 or batch_block == B
    tb = batch_block
    grid = (B // tb,)
    has_mask = mask is not None

    kernel = functools.partial(
        _mha_kernel, num_heads=num_heads, head_size=d, batch_block=tb,
        seq_len=S, emb_size=E, shared_qkv=shared_qkv, has_mask=has_mask,
        compute_dtype=compute_dtype)

    if shared_qkv:
        in_specs = [
            pl.BlockSpec((tb * S, E), lambda b: (b, 0)),            # x rows
            pl.BlockSpec((E, 3 * E), lambda b: (0, 0)),             # Wq|Wk|Wv
            pl.BlockSpec((1, 3 * E), lambda b: (0, 0)),             # bq|bk|bv
        ]
    else:
        in_specs = [
            pl.BlockSpec((3, tb * S, E), lambda b: (0, b, 0)),      # q/k/v rows
            pl.BlockSpec((3, E, E), lambda b: (0, 0, 0)),           # stacked W
            pl.BlockSpec((3, 1, E), lambda b: (0, 0, 0)),           # stacked b
        ]
    args = [x_arg, w_arg, b_arg]

    if has_mask:
        # additive bias in bf16: halves the S^2 DMA stream vs. an f32 mask
        mbias = jnp.where(mask.astype(bool), jnp.float32(-1e9),
                          jnp.float32(0.0)).astype(jnp.bfloat16)    # (B, S, S)
        in_specs.append(pl.BlockSpec((tb, S, S), lambda b: (b, 0, 0)))
        args.append(mbias)

    # generation-aware scoped-VMEM limit (<= ~80% of physical VMEM)
    est = (3 * E * E * itemsize + 12 * E                 # weights + biases
           + 2 * 3 * tb * S * E * itemsize               # double-buffered acts
           + 2 * tb * S * E * 4                          # double-buffered out
           + (2 * tb * S * S * 2 if has_mask else 0)     # mask bias stream
           + tb * S * 3 * E * 4                          # fused projections
           + 6 * tb * S * E * 4                          # head split/merge copies
           + 6 * num_heads * tb * S * S * 4)             # scores / exp / probs
    vmem_limit = int(min(vmem_cap * 4 // 5, max(32 << 20, 2 * est)))

    out2 = pl.pallas_call(
        kernel,
        out_shape=jax.ShapeDtypeStruct((B * S, E), jnp.float32),
        grid_spec=pltpu.PrefetchScalarGridSpec(
            num_scalar_prefetch=0,
            grid=grid,
            in_specs=in_specs,
            out_specs=pl.BlockSpec((tb * S, E), lambda b: (b, 0)),
        ),
        compiler_params=pltpu.CompilerParams(
            dimension_semantics=("parallel",),
            vmem_limit_bytes=vmem_limit),
    )(*args)
    return out2.reshape(B, S, E)


# ---------------------------- plain-JAX reference --------------------------- #
def _reference(query, key, value, params, *, num_heads, mask=None):
    B, S, E = query.shape
    d = E // num_heads
    wq, bq, wk, bk, wv, bv = params

    def proj(x, w, b):
        y = x @ w.T + b                                              # (B,S,E)
        return y.reshape(B, S, num_heads, d).transpose(0, 2, 1, 3)   # (B,H,S,d)

    q, k, v = proj(query, wq, bq), proj(key, wk, bk), proj(value, wv, bv)
    scores = jnp.einsum('bhqd,bhkd->bhqk', q, k) / math.sqrt(d)
    if mask is not None:
        scores = jnp.where(mask[:, None, :, :], -1e9, scores)
    p = jax.nn.softmax(scores, axis=-1)
    out = jnp.einsum('bhqk,bhkd->bhqd', p, v)
    return out.transpose(0, 2, 1, 3).reshape(B, S, E)


# --------------------------------- main ------------------------------------ #
if __name__ == "__main__":
    B, S, E, H = 2, 8, 32, 4          # batch, seq, total_size, num_heads

    root = jax.random.PRNGKey(0)
    k_in, k_w = jax.random.split(root)
    kq, kk, kv = jax.random.split(k_in, 3)

    query = jax.random.normal(kq, (B, S, E), jnp.float32)
    key   = jax.random.normal(kk, (B, S, E), jnp.float32)
    value = jax.random.normal(kv, (B, S, E), jnp.float32)

    bound = 1.0 / math.sqrt(E)
    wkeys = jax.random.split(k_w, 6)
    params = (
        jax.random.uniform(wkeys[0], (E, E), jnp.float32, -bound, bound),  # Wq
        jax.random.uniform(wkeys[1], (E,),   jnp.float32, -bound, bound),  # bq
        jax.random.uniform(wkeys[2], (E, E), jnp.float32, -bound, bound),  # Wk
        jax.random.uniform(wkeys[3], (E,),   jnp.float32, -bound, bound),  # bk
        jax.random.uniform(wkeys[4], (E, E), jnp.float32, -bound, bound),  # Wv
        jax.random.uniform(wkeys[5], (E,),   jnp.float32, -bound, bound),  # bv
    )

    idx = jnp.arange(S)
    causal_mask = jnp.broadcast_to(idx[None, :] > idx[:, None], (B, S, S))

    # 1) distinct q/k/v (stacked-projection path), f32, causal mask
    out = multi_headed_attention(query, key, value, params, num_heads=H,
                                 mask=causal_mask, use_bf16=False)
    out = jax.block_until_ready(out)
    ref = _reference(query, key, value, params, num_heads=H, mask=causal_mask)
    assert out.shape == (B, S, E)
    err = float(jnp.max(jnp.abs(out - ref)))
    assert jnp.allclose(out, ref, atol=2e-2, rtol=2e-2), f"f32 cross mask err {err}"

    # 2) distinct q/k/v, f32, no mask (no mask stream at all)
    out2 = multi_headed_attention(query, key, value, params, num_heads=H,
                                  use_bf16=False)
    out2 = jax.block_until_ready(out2)
    ref2 = _reference(query, key, value, params, num_heads=H)
    err2 = float(jnp.max(jnp.abs(out2 - ref2)))
    assert jnp.allclose(out2, ref2, atol=2e-2, rtol=2e-2), f"f32 cross err {err2}"

    # 3) self-attention (q = k = v -> fused (E,3E) single-matmul path), f32, mask
    out3 = multi_headed_attention(query, query, query, params, num_heads=H,
                                  mask=causal_mask, use_bf16=False)
    out3 = jax.block_until_ready(out3)
    ref3 = _reference(query, query, query, params, num_heads=H, mask=causal_mask)
    err3 = float(jnp.max(jnp.abs(out3 - ref3)))
    assert jnp.allclose(out3, ref3, atol=2e-2, rtol=2e-2), f"f32 self mask err {err3}"

    # 4) default bf16 MXU path (f32 accumulation + f32 softmax), self-attention
    out4 = multi_headed_attention(query, query, query, params, num_heads=H)
    out4 = jax.block_until_ready(out4)
    ref4 = _reference(query, query, query, params, num_heads=H)
    err4 = float(jnp.max(jnp.abs(out4 - ref4)))
    assert jnp.allclose(out4, ref4, atol=1e-1, rtol=1e-1), f"bf16 self err {err4}"

    print("KERNEL_OK")
</pallas_src>

<mosaic_0001>
module attributes {stable_mosaic.version = 11 : i64} {
  func.func @_mha_kernel(%arg0: i32, %arg1: memref<3x8x32xf32, #tpu.memory_space<vmem>>, %arg2: memref<3x32x32xf32, #tpu.memory_space<vmem>>, %arg3: memref<3x1x32xf32, #tpu.memory_space<vmem>>, %arg4: memref<1x8x8xbf16, #tpu.memory_space<vmem>>, %arg5: memref<8x32xf32, #tpu.memory_space<vmem>>) attributes {dimension_semantics = [#tpu.dimension_semantics<parallel>], iteration_bounds = array<i64: 2>, scalar_prefetch = 0 : i64, scratch_operands = 0 : i64, tpu.core_type = #tpu.core_type<tc>, window_params = [{transform_indices = @transform_0, window_bounds = array<i64: 3, 8, 32>}, {pipeline_mode = #tpu.pipeline_mode<synchronous>, transform_indices = @transform_1, window_bounds = array<i64: 3, 32, 32>}, {pipeline_mode = #tpu.pipeline_mode<synchronous>, transform_indices = @transform_2, window_bounds = array<i64: 3, 1, 32>}, {transform_indices = @transform_3, window_bounds = array<i64: 1, 8, 8>}, {transform_indices = @transform_4, window_bounds = array<i64: 8, 32>}]} {
    %c0 = arith.constant 0 : index
    %c0_0 = arith.constant 0 : index
    %c0_1 = arith.constant 0 : index
    %0 = vector.load %arg1[%c0, %c0_0, %c0_1] : memref<3x8x32xf32, #tpu.memory_space<vmem>>, vector<3x8x32xf32>
    %c0_2 = arith.constant 0 : index
    %c0_3 = arith.constant 0 : index
    %c0_4 = arith.constant 0 : index
    %1 = vector.load %arg2[%c0_2, %c0_3, %c0_4] : memref<3x32x32xf32, #tpu.memory_space<vmem>>, vector<3x32x32xf32>
    "tpu.trace_start"() <{level = 10 : i32, message = "nme,nef->nmf"}> : () -> ()
    %cst = arith.constant dense<0.000000e+00> : vector<3x8x32xf32>
    %2 = tpu.matmul %0, %1, %cst {dimension_numbers = #tpu.dot_dimension_numbers<[2], [1], [1], [2], [0, 0, 0, 1, 1, 2], [0], [0]>} : vector<3x8x32xf32>, vector<3x32x32xf32>, vector<3x8x32xf32> -> vector<3x8x32xf32>
    "tpu.trace_stop"() : () -> ()
    %c0_5 = arith.constant 0 : index
    %c0_6 = arith.constant 0 : index
    %c0_7 = arith.constant 0 : index
    %3 = vector.load %arg3[%c0_5, %c0_6, %c0_7] : memref<3x1x32xf32, #tpu.memory_space<vmem>>, vector<3x1x32xf32>
    %4 = vector.broadcast %3 : vector<3x1x32xf32> to vector<3x8x32xf32>
    %5 = arith.addf %2, %4 : vector<3x8x32xf32>
    %6 = vector.extract_strided_slice %5 {offsets = [0, 0, 0], sizes = [1, 8, 32], strides = [1, 1, 1]} : vector<3x8x32xf32> to vector<1x8x32xf32>
    %7 = vector.shape_cast %6 : vector<1x8x32xf32> to vector<8x32xf32>
    %8 = vector.extract_strided_slice %5 {offsets = [1, 0, 0], sizes = [1, 8, 32], strides = [1, 1, 1]} : vector<3x8x32xf32> to vector<1x8x32xf32>
    %9 = vector.shape_cast %8 : vector<1x8x32xf32> to vector<8x32xf32>
    %10 = vector.extract_strided_slice %5 {offsets = [2, 0, 0], sizes = [1, 8, 32], strides = [1, 1, 1]} : vector<3x8x32xf32> to vector<1x8x32xf32>
    %11 = vector.shape_cast %10 : vector<1x8x32xf32> to vector<8x32xf32>
    %12 = vector.extract_strided_slice %7 {offsets = [0, 0], sizes = [8, 8], strides = [1, 1]} : vector<8x32xf32> to vector<8x8xf32>
    %13 = vector.shape_cast %12 : vector<8x8xf32> to vector<1x8x8xf32>
    %14 = vector.extract_strided_slice %7 {offsets = [0, 8], sizes = [8, 8], strides = [1, 1]} : vector<8x32xf32> to vector<8x8xf32>
    %15 = vector.shape_cast %14 : vector<8x8xf32> to vector<1x8x8xf32>
    %16 = vector.extract_strided_slice %7 {offsets = [0, 16], sizes = [8, 8], strides = [1, 1]} : vector<8x32xf32> to vector<8x8xf32>
    %17 = vector.shape_cast %16 : vector<8x8xf32> to vector<1x8x8xf32>
    %18 = vector.extract_strided_slice %7 {offsets = [0, 24], sizes = [8, 8], strides = [1, 1]} : vector<8x32xf32> to vector<8x8xf32>
    %19 = vector.shape_cast %18 : vector<8x8xf32> to vector<1x8x8xf32>
    %20 = tpu.concatenate %13, %15, %17, %19 in 0 : vector<1x8x8xf32>, vector<1x8x8xf32>, vector<1x8x8xf32>, vector<1x8x8xf32> -> vector<4x8x8xf32>
    %21 = vector.extract_strided_slice %9 {offsets = [0, 0], sizes = [8, 8], strides = [1, 1]} : vector<8x32xf32> to vector<8x8xf32>
    %22 = vector.shape_cast %21 : vector<8x8xf32> to vector<1x8x8xf32>
    %23 = vector.extract_strided_slice %9 {offsets = [0, 8], sizes = [8, 8], strides = [1, 1]} : vector<8x32xf32> to vector<8x8xf32>
    %24 = vector.shape_cast %23 : vector<8x8xf32> to vector<1x8x8xf32>
    %25 = vector.extract_strided_slice %9 {offsets = [0, 16], sizes = [8, 8], strides = [1, 1]} : vector<8x32xf32> to vector<8x8xf32>
    %26 = vector.shape_cast %25 : vector<8x8xf32> to vector<1x8x8xf32>
    %27 = vector.extract_strided_slice %9 {offsets = [0, 24], sizes = [8, 8], strides = [1, 1]} : vector<8x32xf32> to vector<8x8xf32>
    %28 = vector.shape_cast %27 : vector<8x8xf32> to vector<1x8x8xf32>
    %29 = tpu.concatenate %22, %24, %26, %28 in 0 : vector<1x8x8xf32>, vector<1x8x8xf32>, vector<1x8x8xf32>, vector<1x8x8xf32> -> vector<4x8x8xf32>
    %30 = vector.extract_strided_slice %11 {offsets = [0, 0], sizes = [8, 8], strides = [1, 1]} : vector<8x32xf32> to vector<8x8xf32>
    %31 = vector.shape_cast %30 : vector<8x8xf32> to vector<1x8x8xf32>
    %32 = vector.extract_strided_slice %11 {offsets = [0, 8], sizes = [8, 8], strides = [1, 1]} : vector<8x32xf32> to vector<8x8xf32>
    %33 = vector.shape_cast %32 : vector<8x8xf32> to vector<1x8x8xf32>
    %34 = vector.extract_strided_slice %11 {offsets = [0, 16], sizes = [8, 8], strides = [1, 1]} : vector<8x32xf32> to vector<8x8xf32>
    %35 = vector.shape_cast %34 : vector<8x8xf32> to vector<1x8x8xf32>
    %36 = vector.extract_strided_slice %11 {offsets = [0, 24], sizes = [8, 8], strides = [1, 1]} : vector<8x32xf32> to vector<8x8xf32>
    %37 = vector.shape_cast %36 : vector<8x8xf32> to vector<1x8x8xf32>
    %38 = tpu.concatenate %31, %33, %35, %37 in 0 : vector<1x8x8xf32>, vector<1x8x8xf32>, vector<1x8x8xf32>, vector<1x8x8xf32> -> vector<4x8x8xf32>
    "tpu.trace_start"() <{level = 10 : i32, message = "nqd,nkd->nqk"}> : () -> ()
    %cst_8 = arith.constant dense<0.000000e+00> : vector<4x8x8xf32>
    %39 = tpu.matmul %20, %29, %cst_8 {dimension_numbers = #tpu.dot_dimension_numbers<[2], [2], [1], [1], [0, 0, 0, 1, 1, 1], [0], [0]>} : vector<4x8x8xf32>, vector<4x8x8xf32>, vector<4x8x8xf32> -> vector<4x8x8xf32>
    "tpu.trace_stop"() : () -> ()
    %c0_9 = arith.constant 0 : index
    %c0_10 = arith.constant 0 : index
    %c0_11 = arith.constant 0 : index
    %40 = vector.load %arg4[%c0_9, %c0_10, %c0_11] : memref<1x8x8xbf16, #tpu.memory_space<vmem>>, vector<1x8x8xbf16>
    %41 = arith.extf %40 : vector<1x8x8xbf16> to vector<1x8x8xf32>
    %42 = vector.shape_cast %39 : vector<4x8x8xf32> to vector<4x1x8x8xf32>
    %43 = vector.shape_cast %41 : vector<1x8x8xf32> to vector<1x1x8x8xf32>
    %44 = vector.broadcast %43 : vector<1x1x8x8xf32> to vector<4x1x8x8xf32>
    %45 = arith.addf %42, %44 : vector<4x1x8x8xf32>
    %46 = vector.shape_cast %45 : vector<4x1x8x8xf32> to vector<4x8x8xf32>
    %cst_12 = arith.constant dense<0xFF800000> : vector<4x8xf32>
    %47 = vector.multi_reduction <maximumf>, %46, %cst_12 [2] : vector<4x8x8xf32> to vector<4x8xf32>
    %48 = vector.shape_cast %47 : vector<4x8xf32> to vector<4x8x1xf32>
    %49 = vector.broadcast %48 : vector<4x8x1xf32> to vector<4x8x8xf32>
    %50 = arith.subf %46, %49 : vector<4x8x8xf32>
    %51 = math.exp %50 : vector<4x8x8xf32>
    %cst_13 = arith.constant dense<0.000000e+00> : vector<4x8xf32>
    %52 = vector.multi_reduction <add>, %51, %cst_13 [2] : vector<4x8x8xf32> to vector<4x8xf32>
    %53 = vector.shape_cast %52 : vector<4x8xf32> to vector<4x8x1xf32>
    %54 = tpu.reciprocal %53 {approx = true} : vector<4x8x1xf32> -> vector<4x8x1xf32>
    %55 = vector.broadcast %54 : vector<4x8x1xf32> to vector<4x8x8xf32>
    %56 = arith.mulf %51, %55 : vector<4x8x8xf32>
    "tpu.trace_start"() <{level = 10 : i32, message = "nqk,nkd->nqd"}> : () -> ()
    %cst_14 = arith.constant dense<0.000000e+00> : vector<4x8x8xf32>
    %57 = tpu.matmul %56, %38, %cst_14 {dimension_numbers = #tpu.dot_dimension_numbers<[2], [1], [1], [2], [0, 0, 0, 1, 1, 2], [0], [0]>} : vector<4x8x8xf32>, vector<4x8x8xf32>, vector<4x8x8xf32> -> vector<4x8x8xf32>
    "tpu.trace_stop"() : () -> ()
    %58 = vector.extract_strided_slice %57 {offsets = [0, 0, 0], sizes = [1, 8, 8], strides = [1, 1, 1]} : vector<4x8x8xf32> to vector<1x8x8xf32>
    %59 = vector.extract_strided_slice %57 {offsets = [1, 0, 0], sizes = [1, 8, 8], strides = [1, 1, 1]} : vector<4x8x8xf32> to vector<1x8x8xf32>
    %60 = vector.extract_strided_slice %57 {offsets = [2, 0, 0], sizes = [1, 8, 8], strides = [1, 1, 1]} : vector<4x8x8xf32> to vector<1x8x8xf32>
    %61 = vector.extract_strided_slice %57 {offsets = [3, 0, 0], sizes = [1, 8, 8], strides = [1, 1, 1]} : vector<4x8x8xf32> to vector<1x8x8xf32>
    %62 = tpu.concatenate %58, %59, %60, %61 in 2 : vector<1x8x8xf32>, vector<1x8x8xf32>, vector<1x8x8xf32>, vector<1x8x8xf32> -> vector<1x8x32xf32>
    %63 = vector.shape_cast %62 : vector<1x8x32xf32> to vector<8x32xf32>
    %c0_15 = arith.constant 0 : index
    %c0_16 = arith.constant 0 : index
    %64 = vector.load %arg5[%c0_15, %c0_16] : memref<8x32xf32, #tpu.memory_space<vmem>>, vector<8x32xf32>
    tpu.vector_store %arg5[%c0_15, %c0_16], %63 {strides = array<i32>} : memref<8x32xf32, #tpu.memory_space<vmem>>, vector<8x32xf32>,
    return
  }
  func.func @transform_0(%arg0: i32) -> (i32, i32, i32) {
    %c0_i32 = arith.constant 0 : i32
    %c0_i32_0 = arith.constant 0 : i32
    %c0_i32_1 = arith.constant 0 : i32
    return %c0_i32, %arg0, %c0_i32_0 : i32, i32, i32
  }
  func.func @transform_1(%arg0: i32) -> (i32, i32, i32) {
    %c0_i32 = arith.constant 0 : i32
    %c0_i32_0 = arith.constant 0 : i32
    %c0_i32_1 = arith.constant 0 : i32
    %c0_i32_2 = arith.constant 0 : i32
    return %c0_i32, %c0_i32_0, %c0_i32_1 : i32, i32, i32
  }
  func.func @transform_2(%arg0: i32) -> (i32, i32, i32) {
    %c0_i32 = arith.constant 0 : i32
    %c0_i32_0 = arith.constant 0 : i32
    %c0_i32_1 = arith.constant 0 : i32
    %c0_i32_2 = arith.constant 0 : i32
    return %c0_i32, %c0_i32_0, %c0_i32_1 : i32, i32, i32
  }
  func.func @transform_3(%arg0: i32) -> (i32, i32, i32) {
    %c0_i32 = arith.constant 0 : i32
    %c0_i32_0 = arith.constant 0 : i32
    %c0_i32_1 = arith.constant 0 : i32
    return %arg0, %c0_i32, %c0_i32_0 : i32, i32, i32
  }
  func.func @transform_4(%arg0: i32) -> (i32, i32) {
    %c0_i32 = arith.constant 0 : i32
    %c0_i32_0 = arith.constant 0 : i32
    return %arg0, %c0_i32 : i32, i32
  }
}

</mosaic_0001>

<llo_original>
// kernel: tpu_custom_call.1
$region0: #{tpu_custom_call.1}
  #allocation0 [shape = 'u32[]', space=smem, size = 0x4, offset = 0x4, fixed_abs, tag = 'smem constant byte address 0x4 - core index']
  #allocation1 [shape = 'u32[144,128]{1,0:T(1,128)}', space=vmem, size = 0x12000, scoped, tag = 'internal scratch']
  %s0 = inlined_call_operand.hbm [shape: f32[3,16,32], index: 0, kind: input, shape index: {}]
  %s1 = inlined_call_operand.hbm [shape: f32[3,32,32], index: 1, kind: input, shape index: {}]
  %s2 = inlined_call_operand.vmem [shape: f32[3,1,32], index: 2, kind: input, shape index: {}]
  %s3 = inlined_call_operand.vmem [shape: bf16[2,8,8], index: 3, kind: input, shape index: {}]
  %s4 = inlined_call_operand.hbm [shape: f32[16,32], index: 4, kind: output, shape index: {}]
  %s5 = sld [smem:[#allocation0]]
  $region57: #{tpu_custom_call.1} parent=0
    _
  %s7 = ssub.s32 1, %s5
  %s8 = scalar_select 0, %s7, %s5
  $region1: #{tpu_custom_call.1} parent=0
    #allocation2 [shape = 'u8[24576]{0}', space=vmem, size = 0x6000, scoped, tag = 'input window, operand 0']
    #allocation3 [shape = 's32[2]{0}', space=sflag, size = 0x8, scoped, tag = 'scoped memory for tpu_custom_call.1']
    #allocation4 [shape = 's32[2]{0}', space=sflag, size = 0x8, scoped, tag = 'scoped memory for tpu_custom_call.1']
    #allocation5 [shape = 'u8[49152]{0}', space=vmem, size = 0xc000, scoped, tag = 'input window, operand 1, single buffered']
    #allocation6 [shape = 's32[1]{0}', space=sflag, size = 0x4, scoped, tag = 'scoped memory for tpu_custom_call.1']
    #allocation7 [shape = 'u8[8192]{0}', space=vmem, size = 0x2000, scoped, tag = 'output window, operand 0']
    %9 = vsyncpa [#allocation3], 0
    %s10 = scalar_lea.sflag [#allocation3], 1
    %11 = vsyncpa %s10, 0
    %12 = vsyncpa [#allocation6], 0
    %13 = vsyncpa [#allocation4], 0
    %s14 = scalar_lea.sflag [#allocation4], 1
    %15 = vsyncpa %s14, 0
    loop: start=0, step=1, limit=4
    $region2: #{tpu_custom_call.1} parent=1 // loop_pre_header
      _
    $region3: #{tpu_custom_call.1} parent=1 // loop_header
      %s17 = sphi 0, %s21
      %p18 = scmp.ge.s32.totalorder %s17, 4
      %s27 = sphi 0, %s29
      %s30 = sphi 0, %s27
      %s31 = sphi 0, %s30
      %s47 = sphi 0, %s31
      %s51 = sphi 0, %s51
      %s53 = sphi 0, %s51
      %s54 = sphi 0, %s53
      %s68 = sphi 0, %s54
      %s72 = sphi 0, %s72
      %s74 = sphi 0, %s72
      %s75 = sphi 0, %s74
      %s89 = sphi 0, %s75
      %s95 = sphi 0, %s97
      %s98 = sphi 0, %s95
      %s99 = sphi 0, %s98
      %s115 = sphi 0, %s99
      %s121 = sphi 0, %s123
      %s124 = sphi 0, %s121
      %s125 = sphi 0, %s124
      %s141 = sphi 0, %s125
    $region4: #{tpu_custom_call.1} parent=1 // loop_header_branch
      %20 = sbr.rel (%p18) target = $region8
    $region5: #{tpu_custom_call.1} parent=1 // loop_body
      %s22 = ssub.s32 %s17, 1
      %s23 = ssub.s32 %s17, 2
      %s24 = sadd.s32 %s17, 1
      %s25 = ssub.s32 %s17, %s24
      %p26 = scmp.eq.s32.totalorder %s25, 0
      %s28 = sadd.s32 %s27, 1
      %s29 = scalar_select %p26, %s27, %s28
      %p32 = pneg %p26
      %p33 = scmp.eq.s32.totalorder %s17, 1
      %p34 = por %p32, %p33
      %p35 = scmp.ne.s32.totalorder %s27, %s30
      %p36 = scmp.eq.s32.totalorder %s17, 0
      %p37 = por %p35, %p36
      %p38 = scmp.ne.s32.totalorder %s27, %s30
      %p39 = scmp.eq.s32.totalorder %s22, 1
      %p40 = por %p38, %p39
      %p41 = scmp.ne.s32.totalorder %s30, %s31
      %p42 = scmp.eq.s32.totalorder %s22, 0
      %p43 = por %p41, %p42
      %p44 = scmp.ne.s32.totalorder %s30, %s31
      %p45 = scmp.eq.s32.totalorder %s23, 1
      %p46 = por %p44, %p45
      %p48 = scmp.ne.s32.totalorder %s31, %s47
      %p49 = scmp.eq.s32.totalorder %s23, 0
      %p50 = por %p48, %p49
      %s52 = sadd.s32 %s51, 1
      %p55 = scmp.eq.s32.totalorder %s17, 1
      %p56 = scmp.ne.s32.totalorder %s51, %s53
      %p57 = scmp.eq.s32.totalorder %s17, 0
      %p58 = por %p56, %p57
      %p59 = scmp.ne.s32.totalorder %s51, %s53
      %p60 = scmp.eq.s32.totalorder %s22, 1
      %p61 = por %p59, %p60
      %p62 = scmp.ne.s32.totalorder %s53, %s54
      %p63 = scmp.eq.s32.totalorder %s22, 0
      %p64 = por %p62, %p63
      %p65 = scmp.ne.s32.totalorder %s53, %s54
      %p66 = scmp.eq.s32.totalorder %s23, 1
      %p67 = por %p65, %p66
      %p69 = scmp.ne.s32.totalorder %s54, %s68
      %p70 = scmp.eq.s32.totalorder %s23, 0
      %p71 = por %p69, %p70
      %s73 = sadd.s32 %s72, 1
      %p76 = scmp.eq.s32.totalorder %s17, 1
      %p77 = scmp.ne.s32.totalorder %s72, %s74
      %p78 = scmp.eq.s32.totalorder %s17, 0
      %p79 = por %p77, %p78
      %p80 = scmp.ne.s32.totalorder %s72, %s74
      %p81 = scmp.eq.s32.totalorder %s22, 1
      %p82 = por %p80, %p81
      %p83 = scmp.ne.s32.totalorder %s74, %s75
      %p84 = scmp.eq.s32.totalorder %s22, 0
      %p85 = por %p83, %p84
      %p86 = scmp.ne.s32.totalorder %s74, %s75
      %p87 = scmp.eq.s32.totalorder %s23, 1
      %p88 = por %p86, %p87
      %p90 = scmp.ne.s32.totalorder %s75, %s89
      %p91 = scmp.eq.s32.totalorder %s23, 0
      %p92 = por %p90, %p91
      %s93 = ssub.s32 %s17, %s24
      %p94 = scmp.eq.s32.totalorder %s93, 0
      %s96 = sadd.s32 %s95, 1
      %s97 = scalar_select %p94, %s95, %s96
      %p100 = pneg %p94
      %p101 = scmp.eq.s32.totalorder %s17, 1
      %p102 = por %p100, %p101
      %p103 = scmp.ne.s32.totalorder %s95, %s98
      %p104 = scmp.eq.s32.totalorder %s17, 0
      %p105 = por %p103, %p104
      %p106 = scmp.ne.s32.totalorder %s95, %s98
      %p107 = scmp.eq.s32.totalorder %s22, 1
      %p108 = por %p106, %p107
      %p109 = scmp.ne.s32.totalorder %s98, %s99
      %p110 = scmp.eq.s32.totalorder %s22, 0
      %p111 = por %p109, %p110
      %p112 = scmp.ne.s32.totalorder %s98, %s99
      %p113 = scmp.eq.s32.totalorder %s23, 1
      %p114 = por %p112, %p113
      %p116 = scmp.ne.s32.totalorder %s99, %s115
      %p117 = scmp.eq.s32.totalorder %s23, 0
      %p118 = por %p116, %p117
      %s119 = ssub.s32 %s17, %s24
      %p120 = scmp.eq.s32.totalorder %s119, 0
      %s122 = sadd.s32 %s121, 1
      %s123 = scalar_select %p120, %s121, %s122
      %p126 = pneg %p120
      %p127 = scmp.eq.s32.totalorder %s17, 1
      %p128 = por %p126, %p127
      %p129 = scmp.ne.s32.totalorder %s121, %s124
      %p130 = scmp.eq.s32.totalorder %s17, 0
      %p131 = por %p129, %p130
      %p132 = scmp.ne.s32.totalorder %s121, %s124
      %p133 = scmp.eq.s32.totalorder %s22, 1
      %p134 = por %p132, %p133
      %p135 = scmp.ne.s32.totalorder %s124, %s125
      %p136 = scmp.eq.s32.totalorder %s22, 0
      %p137 = por %p135, %p136
      %p138 = scmp.ne.s32.totalorder %s124, %s125
      %p139 = scmp.eq.s32.totalorder %s23, 1
      %p140 = por %p138, %p139
      %p142 = scmp.ne.s32.totalorder %s125, %s141
      %p143 = scmp.eq.s32.totalorder %s23, 0
      %p144 = por %p142, %p143
      %p145 = scmp.le.s32.totalorder 1, %s17
      %p146 = scmp.lt.s32.totalorder %s17, 3
      %p147 = pnand %p145, %p146
      %p148 = pneg %p147
      // Predicated region
      $region9: #{tpu_custom_call.1} parent=5 // pred_check
        _
      $region10: #{tpu_custom_call.1} parent=5 // pred_check_branch
        %150 = sbr.rel (%p147) target = $region12
      $region11: #{tpu_custom_call.1} parent=5 // pred_region
        %s151 = ssub.s32 %s17, 1
        // Predicated region
        $region13: #{tpu_custom_call.1} parent=11 // pred_check
          %p152 = pneg %p64
        $region14: #{tpu_custom_call.1} parent=11 // pred_check_branch
          %154 = sbr.rel (%p152) target = $region16
        $region15: #{tpu_custom_call.1} parent=11 // pred_region
          %s156 = ssub.s32 1536, 1536
          %157 = vsyncadd [#allocation6], %s156
          %s158 = sshll.u32 [#allocation5], 4
          %s159 = int_to_ptr.vmem [resolvable:$true] %s158
          %164 = dma.hbm_to_vmem [thread:$0]  %s1, 1536, %s159, [#allocation6], 128, 128, 8
        $region16: #{tpu_custom_call.1} parent=11 // pred_fallthru
          _
        // Predicated region
        $region17: #{tpu_custom_call.1} parent=11 // pred_check
          %p165 = pneg %p85
        $region18: #{tpu_custom_call.1} parent=11 // pred_check_branch
          %167 = sbr.rel (%p165) target = $region20
        $region19: #{tpu_custom_call.1} parent=11 // pred_region
          _
        $region20: #{tpu_custom_call.1} parent=11 // pred_fallthru
          _
      $region12: #{tpu_custom_call.1} parent=5 // pred_fallthru
        _
      %p168 = scmp.lt.s32.totalorder %s17, 2
      // Predicated region
      $region21: #{tpu_custom_call.1} parent=5 // pred_check
        %p169 = pneg %p168
      $region22: #{tpu_custom_call.1} parent=5 // pred_check_branch
        %171 = sbr.rel (%p169) target = $region24
      $region23: #{tpu_custom_call.1} parent=5 // pred_region
        // Predicated region
        $region25: #{tpu_custom_call.1} parent=23 // pred_check
          %p172 = pneg %p37
        $region26: #{tpu_custom_call.1} parent=23 // pred_check_branch
          %174 = sbr.rel (%p172) target = $region28
        $region27: #{tpu_custom_call.1} parent=23 // pred_region
          %s175 = sand.u32 %s27, 1
          %s176 = scalar_lea.sflag [#allocation3], %s175
          %s177 = sand.u32 %s27, 1
          %s178 = smul.addr %s177, 24
          %s179 = scalar_lea.vmem [#allocation2], %s178
          %s181 = ssub.s32 384, 384
          %182 = vsyncadd %s176, %s181
          %s183 = smul.addr %s17, 128
          %s184 = scalar_lea.hbm %s0, %s183
          %s185 = sshll.u32 %s179, 4
          %s186 = int_to_ptr.vmem [resolvable:$true] %s185
          %191 = dma.hbm_to_vmem [thread:$0]  %s184, 384, %s186, %s176, 256, 128, 8
        $region28: #{tpu_custom_call.1} parent=23 // pred_fallthru
          _
        // Predicated region
        $region29: #{tpu_custom_call.1} parent=23 // pred_check
          %p192 = pneg %p105
        $region30: #{tpu_custom_call.1} parent=23 // pred_check_branch
          %194 = sbr.rel (%p192) target = $region32
        $region31: #{tpu_custom_call.1} parent=23 // pred_region
          %p195 = scmp.lt.s32.totalorder %s17, 1
          %s196 = scalar_select %p195, %s17, 1
          %s197 = smul.addr %s196, 4
          %s198 = scalar_lea.vmem %s3, %s197
        $region32: #{tpu_custom_call.1} parent=23 // pred_fallthru
          _
      $region24: #{tpu_custom_call.1} parent=5 // pred_fallthru
        _
      %p199 = scmp.le.s32.totalorder 1, %s17
      %p200 = scmp.lt.s32.totalorder %s17, 3
      %p201 = pnand %p199, %p200
      %p202 = pneg %p201
      // Predicated region
      $region33: #{tpu_custom_call.1} parent=5 // pred_check
        _
      $region34: #{tpu_custom_call.1} parent=5 // pred_check_branch
        %204 = sbr.rel (%p201) target = $region36
      $region35: #{tpu_custom_call.1} parent=5 // pred_region
        %s205 = ssub.s32 %s17, 1
        %s206 = sand.u32 %s30, 1
        %s207 = scalar_lea.sflag [#allocation3], %s206
        %s208 = sand.u32 %s30, 1
        %s209 = smul.addr %s208, 24
        %s210 = scalar_lea.vmem [#allocation2], %s209
        // Predicated region
        $region37: #{tpu_custom_call.1} parent=35 // pred_check
          %p211 = pneg %p43
        $region38: #{tpu_custom_call.1} parent=35 // pred_check_branch
          %213 = sbr.rel (%p211) target = $region40
        $region39: #{tpu_custom_call.1} parent=35 // pred_region
          %214 = dma.done %s207, 384
        $region40: #{tpu_custom_call.1} parent=35 // pred_fallthru
          _
        // Predicated region
        $region41: #{tpu_custom_call.1} parent=35 // pred_check
          %p215 = pneg %p64
        $region42: #{tpu_custom_call.1} parent=35 // pred_check_branch
          %217 = sbr.rel (%p215) target = $region44
        $region43: #{tpu_custom_call.1} parent=35 // pred_region
          %218 = dma.done [#allocation6], 1536
        $region44: #{tpu_custom_call.1} parent=35 // pred_fallthru
          _
        %s219 = sand.u32 %s30, 1
        %s220 = scalar_lea.sflag [#allocation3], %s219
        %s221 = sand.u32 %s30, 1
        %s222 = smul.addr %s221, 24
        %s223 = scalar_lea.vmem [#allocation2], %s222
        %p224 = pneg %p43
        %p225 = pneg %p40
        %p226 = pneg %p64
        %p227 = pneg %p61
        %p228 = pneg %p85
        %p229 = pneg %p82
        %p230 = scmp.lt.s32.totalorder %s22, 1
        %s231 = scalar_select %p230, %s22, 1
        %s232 = smul.addr %s231, 4
        %s233 = scalar_lea.vmem %s3, %s232
        %p234 = pneg %p111
        %p235 = pneg %p108
        %p236 = pneg %p137
        %p237 = pneg %p134
        %s238 = sand.u32 %s124, 1
        %s239 = scalar_lea.sflag [#allocation4], %s238
        %s240 = sand.u32 %s124, 1
        %s241 = smul.addr %s240, 8
        %s242 = scalar_lea.vmem [#allocation7], %s241
        %p243 = scmp.lt.s32.totalorder %s22, 1
        %s244 = scalar_select %p243, %s22, 1
        %s245 = smul.addr %s244, 4
        %s246 = scalar_lea.vmem %s3, %s245
        %v247 = vld [vmem:[%s210] sm:$0xff]
        %v248 = vld [vmem:[%s210 + $0x8] sm:$0xff]
        %v249 = vld [vmem:[%s210 + $0x10] sm:$0xff]
        %v250 = vld [vmem:[#allocation5] sm:$0xff]
        %v251 = vld [vmem:[#allocation5 + $0x8] sm:$0xff]
        %v252 = vld [vmem:[#allocation5 + $0x10] sm:$0xff]
        %v253 = vld [vmem:[#allocation5 + $0x18] sm:$0xff]
        %v254 = vld [vmem:[#allocation5 + $0x20] sm:$0xff]
        %v255 = vld [vmem:[#allocation5 + $0x28] sm:$0xff]
        %v256 = vld [vmem:[#allocation5 + $0x30] sm:$0xff]
        %v257 = vld [vmem:[#allocation5 + $0x38] sm:$0xff]
        %v258 = vld [vmem:[#allocation5 + $0x40] sm:$0xff]
        %v259 = vld [vmem:[#allocation5 + $0x48] sm:$0xff]
        %v260 = vld [vmem:[#allocation5 + $0x50] sm:$0xff]
        %v261 = vld [vmem:[#allocation5 + $0x58] sm:$0xff]
        %v262 = vld [vmem:[%s2] sm:$0x1]
        %v263 = vld [vmem:[%s2 + $0x1] sm:$0x1]
        %v264 = vld [vmem:[%s2 + $0x2] sm:$0x1]
        %v268 = vlaneseq
        %v269 = vshrl.u32 %v268, 7
        %v270 = vsub.s32 0, %v269
        %v271 = vrot.slane %v262, %v270
        %v272 = vlaneseq
        %v273 = vshrl.u32 %v272, 7
        %v274 = vsub.s32 0, %v273
        %v275 = vrot.slane %v263, %v274
        %v276 = vlaneseq
        %v277 = vshrl.u32 %v276, 7
        %v278 = vsub.s32 0, %v277
        %v279 = vrot.slane %v264, %v278
        %vm283 = vcmask 261120
        %v285 = vsel %vm283, %v247, 0
        %287 = vmatprep.subr.mxu0 0.0
        %288 = vmatpush1.msra.mxu0 %v250
        %289 = vmatprep.subr.mxu0 0.0
        %290 = vmatpush1.msra.mxu0 %v251
        %291 = vmatprep.subr.mxu0 0.0
        %292 = vmatpush1.msra.mxu0 %v252
        %293 = vmatprep.subr.mxu0 0.0
        %294 = vmatpush1.msra.mxu0 %v253
        %295 = vmatprep.subr.mxu0 0.0
        %296 = vmatpush1.msra.mxu0 0.0
        %297 = vmatprep.subr.mxu0 0.0
        %298 = vmatpush1.msra.mxu0 0.0
        %299 = vmatprep.subr.mxu0 0.0
        %300 = vmatpush1.msra.mxu0 0.0
        %301 = vmatprep.subr.mxu0 0.0
        %302 = vmatpush1.msra.mxu0 0.0
        %303 = vmatprep.subr.mxu0 0.0
        %304 = vmatpush1.msra.mxu0 0.0
        %305 = vmatprep.subr.mxu0 0.0
        %306 = vmatpush1.msra.mxu0 0.0
        %307 = vmatprep.subr.mxu0 0.0
        %308 = vmatpush1.msra.mxu0 0.0
        %309 = vmatprep.subr.mxu0 0.0
        %310 = vmatpush1.msra.mxu0 0.0
        %311 = vmatprep.subr.mxu0 0.0
        %312 = vmatpush1.msra.mxu0 0.0
        %313 = vmatprep.subr.mxu0 0.0
        %314 = vmatpush1.msra.mxu0 0.0
        %315 = vmatprep.subr.mxu0 0.0
        %316 = vmatpush1.msra.mxu0 0.0
        %317 = vmatprep.subr.mxu0 0.0
        %318 = vmatpush1.msra.mxu0 0.0
        %319 = vmatprep.subr.mxu0 0.0
        %320 = vmatpush1.msra.mxu0 0.0
        %321 = vmatprep.subr.mxu0 0.0
        %322 = vmatpush1.msra.mxu0 0.0
        %323 = vmatprep.subr.mxu0 0.0
        %324 = vmatpush1.msra.mxu0 0.0
        %325 = vmatprep.subr.mxu0 0.0
        %326 = vmatpush1.msra.mxu0 0.0
        %327 = vmatprep.subr.mxu0 0.0
        %328 = vmatpush1.msra.mxu0 0.0
        %329 = vmatprep.subr.mxu0 0.0
        %330 = vmatpush1.msra.mxu0 0.0
        %331 = vmatprep.subr.mxu0 0.0
        %332 = vmatpush1.msra.mxu0 0.0
        %333 = vmatprep.subr.mxu0 0.0
        %334 = vmatpush1.msra.mxu0 0.0
        %335 = vmatprep.subr.mxu0 0.0
        %336 = vmatpush1.msra.mxu0 0.0
        %337 = vmatprep.subr.mxu0 0.0
        %338 = vmatpush1.msra.mxu0 0.0
        %339 = vmatprep.subr.mxu0 0.0
        %340 = vmatpush1.msra.mxu0 0.0
        %341 = vmatprep.subr.mxu0 0.0
        %342 = vmatpush1.msra.mxu0 0.0
        %343 = vmatprep.subr.mxu0 0.0
        %344 = vmatpush1.msra.mxu0 0.0
        %345 = vmatprep.subr.mxu0 0.0
        %346 = vmatpush1.msra.mxu0 0.0
        %347 = vmatprep.subr.mxu0 0.0
        %348 = vmatpush1.msra.mxu0 0.0
        %349 = vmatprep.subr.mxu0 0.0
        %350 = vmatpush1.msra.mxu0 0.0
        %351 = vmatprep.mubr.f32.mxu0 0.0
        %352 = vmatmul.mubr.f32.gmra.mrb[0].mxu0 %v285
        %v353 = vpop.f32.mrb[0].mxu0
        %v354 = vadd.f32 %v271, %v353
        %v355 = vpop.f32.mrb[0].mxu0
        %356 = vdwg.mxu0
        %v358 = vsel %vm283, %v248, 0
        %360 = vmatprep.subr.mxu0 0.0
        %361 = vmatpush1.msra.mxu0 %v254
        %362 = vmatprep.subr.mxu0 0.0
        %363 = vmatpush1.msra.mxu0 %v255
        %364 = vmatprep.subr.mxu0 0.0
        %365 = vmatpush1.msra.mxu0 %v256
        %366 = vmatprep.subr.mxu0 0.0
        %367 = vmatpush1.msra.mxu0 %v257
        %368 = vmatprep.subr.mxu0 0.0
        %369 = vmatpush1.msra.mxu0 0.0
        %370 = vmatprep.subr.mxu0 0.0
        %371 = vmatpush1.msra.mxu0 0.0
        %372 = vmatprep.subr.mxu0 0.0
        %373 = vmatpush1.msra.mxu0 0.0
        %374 = vmatprep.subr.mxu0 0.0
        %375 = vmatpush1.msra.mxu0 0.0
        %376 = vmatprep.subr.mxu0 0.0
        %377 = vmatpush1.msra.mxu0 0.0
        %378 = vmatprep.subr.mxu0 0.0
        %379 = vmatpush1.msra.mxu0 0.0
        %380 = vmatprep.subr.mxu0 0.0
        %381 = vmatpush1.msra.mxu0 0.0
        %382 = vmatprep.subr.mxu0 0.0
        %383 = vmatpush1.msra.mxu0 0.0
        %384 = vmatprep.subr.mxu0 0.0
        %385 = vmatpush1.msra.mxu0 0.0
        %386 = vmatprep.subr.mxu0 0.0
        %387 = vmatpush1.msra.mxu0 0.0
        %388 = vmatprep.subr.mxu0 0.0
        %389 = vmatpush1.msra.mxu0 0.0
        %390 = vmatprep.subr.mxu0 0.0
        %391 = vmatpush1.msra.mxu0 0.0
        %392 = vmatprep.subr.mxu0 0.0
        %393 = vmatpush1.msra.mxu0 0.0
        %394 = vmatprep.subr.mxu0 0.0
        %395 = vmatpush1.msra.mxu0 0.0
        %396 = vmatprep.subr.mxu0 0.0
        %397 = vmatpush1.msra.mxu0 0.0
        %398 = vmatprep.subr.mxu0 0.0
        %399 = vmatpush1.msra.mxu0 0.0
        %400 = vmatprep.subr.mxu0 0.0
        %401 = vmatpush1.msra.mxu0 0.0
        %402 = vmatprep.subr.mxu0 0.0
        %403 = vmatpush1.msra.mxu0 0.0
        %404 = vmatprep.subr.mxu0 0.0
        %405 = vmatpush1.msra.mxu0 0.0
        %406 = vmatprep.subr.mxu0 0.0
        %407 = vmatpush1.msra.mxu0 0.0
        %408 = vmatprep.subr.mxu0 0.0
        %409 = vmatpush1.msra.mxu0 0.0
        %410 = vmatprep.subr.mxu0 0.0
        %411 = vmatpush1.msra.mxu0 0.0
        %412 = vmatprep.subr.mxu0 0.0
        %413 = vmatpush1.msra.mxu0 0.0
        %414 = vmatprep.subr.mxu0 0.0
        %415 = vmatpush1.msra.mxu0 0.0
        %416 = vmatprep.subr.mxu0 0.0
        %417 = vmatpush1.msra.mxu0 0.0
        %418 = vmatprep.subr.mxu0 0.0
        %419 = vmatpush1.msra.mxu0 0.0
        %420 = vmatprep.subr.mxu0 0.0
        %421 = vmatpush1.msra.mxu0 0.0
        %422 = vmatprep.subr.mxu0 0.0
        %423 = vmatpush1.msra.mxu0 0.0
        %424 = vmatprep.mubr.f32.mxu0 0.0
        %425 = vmatmul.mubr.f32.gmra.mrb[0].mxu0 %v358
        %v426 = vpop.f32.mrb[0].mxu0
        %v427 = vadd.f32 %v275, %v426
        %v428 = vpop.f32.mrb[0].mxu0
        %429 = vdwg.mxu0
        %v431 = vsel %vm283, %v249, 0
        %433 = vmatprep.subr.mxu0 0.0
        %434 = vmatpush1.msra.mxu0 %v258
        %435 = vmatprep.subr.mxu0 0.0
        %436 = vmatpush1.msra.mxu0 %v259
        %437 = vmatprep.subr.mxu0 0.0
        %438 = vmatpush1.msra.mxu0 %v260
        %439 = vmatprep.subr.mxu0 0.0
        %440 = vmatpush1.msra.mxu0 %v261
        %441 = vmatprep.subr.mxu0 0.0
        %442 = vmatpush1.msra.mxu0 0.0
        %443 = vmatprep.subr.mxu0 0.0
        %444 = vmatpush1.msra.mxu0 0.0
        %445 = vmatprep.subr.mxu0 0.0
        %446 = vmatpush1.msra.mxu0 0.0
        %447 = vmatprep.subr.mxu0 0.0
        %448 = vmatpush1.msra.mxu0 0.0
        %449 = vmatprep.subr.mxu0 0.0
        %450 = vmatpush1.msra.mxu0 0.0
        %451 = vmatprep.subr.mxu0 0.0
        %452 = vmatpush1.msra.mxu0 0.0
        %453 = vmatprep.subr.mxu0 0.0
        %454 = vmatpush1.msra.mxu0 0.0
        %455 = vmatprep.subr.mxu0 0.0
        %456 = vmatpush1.msra.mxu0 0.0
        %457 = vmatprep.subr.mxu0 0.0
        %458 = vmatpush1.msra.mxu0 0.0
        %459 = vmatprep.subr.mxu0 0.0
        %460 = vmatpush1.msra.mxu0 0.0
        %461 = vmatprep.subr.mxu0 0.0
        %462 = vmatpush1.msra.mxu0 0.0
        %463 = vmatprep.subr.mxu0 0.0
        %464 = vmatpush1.msra.mxu0 0.0
        %465 = vmatprep.subr.mxu0 0.0
        %466 = vmatpush1.msra.mxu0 0.0
        %467 = vmatprep.subr.mxu0 0.0
        %468 = vmatpush1.msra.mxu0 0.0
        %469 = vmatprep.subr.mxu0 0.0
        %470 = vmatpush1.msra.mxu0 0.0
        %471 = vmatprep.subr.mxu0 0.0
        %472 = vmatpush1.msra.mxu0 0.0
        %473 = vmatprep.subr.mxu0 0.0
        %474 = vmatpush1.msra.mxu0 0.0
        %475 = vmatprep.subr.mxu0 0.0
        %476 = vmatpush1.msra.mxu0 0.0
        %477 = vmatprep.subr.mxu0 0.0
        %478 = vmatpush1.msra.mxu0 0.0
        %479 = vmatprep.subr.mxu0 0.0
        %480 = vmatpush1.msra.mxu0 0.0
        %481 = vmatprep.subr.mxu0 0.0
        %482 = vmatpush1.msra.mxu0 0.0
        %483 = vmatprep.subr.mxu0 0.0
        %484 = vmatpush1.msra.mxu0 0.0
        %485 = vmatprep.subr.mxu0 0.0
        %486 = vmatpush1.msra.mxu0 0.0
        %487 = vmatprep.subr.mxu0 0.0
        %488 = vmatpush1.msra.mxu0 0.0
        %489 = vmatprep.subr.mxu0 0.0
        %490 = vmatpush1.msra.mxu0 0.0
        %491 = vmatprep.subr.mxu0 0.0
        %492 = vmatpush1.msra.mxu0 0.0
        %493 = vmatprep.subr.mxu0 0.0
        %494 = vmatpush1.msra.mxu0 0.0
        %495 = vmatprep.subr.mxu0 0.0
        %496 = vmatpush1.msra.mxu0 0.0
        %497 = vmatprep.mubr.f32.mxu0 0.0
        %498 = vmatmul.mubr.f32.gmra.mrb[0].mxu0 %v431
        %v499 = vpop.f32.mrb[0].mxu0
        %v500 = vadd.f32 %v279, %v499
        %v501 = vpop.f32.mrb[0].mxu0
        %502 = vdwg.mxu0
        %504 = vrot.lane.b32.xlu0 %v354, 120
        %v505 = vpop.permute.xlu0 %504
        %506 = vrot.lane.b32.xlu0 %v354, 112
        %v507 = vpop.permute.xlu0 %506
        %508 = vrot.lane.b32.xlu0 %v354, 104
        %v509 = vpop.permute.xlu0 %508
        %511 = vrot.lane.b32.xlu0 %v427, 120
        %v512 = vpop.permute.xlu0 %511
        %513 = vrot.lane.b32.xlu0 %v427, 112
        %v514 = vpop.permute.xlu0 %513
        %515 = vrot.lane.b32.xlu0 %v427, 104
        %v516 = vpop.permute.xlu0 %515
        %518 = vrot.lane.b32.xlu0 %v500, 120
        %v519 = vpop.permute.xlu0 %518
        %521 = vrot.lane.b32.xlu0 %v500, 112
        %v522 = vpop.permute.xlu0 %521
        %524 = vrot.lane.b32.xlu0 %v500, 104
        %v525 = vpop.permute.xlu0 %524
        %vm527 = vcmask 64512
        %v528 = vsel %vm527, %v354, 0
        %v530 = vsel %vm527, %v427, 0
        %532 = vmatprep.subr.mxu0 0.0
        %533 = vmatpush1.xpose.msra.mxu0 %v530
        %534 = vmatprep.subr.mxu0 0.0
        %535 = vmatpush1.xpose.msra.mxu0 0.0
        %536 = vmatprep.subr.mxu0 0.0
        %537 = vmatpush1.xpose.msra.mxu0 0.0
        %538 = vmatprep.subr.mxu0 0.0
        %539 = vmatpush1.xpose.msra.mxu0 0.0
        %540 = vmatprep.subr.mxu0 0.0
        %541 = vmatpush1.xpose.msra.mxu0 0.0
        %542 = vmatprep.subr.mxu0 0.0
        %543 = vmatpush1.xpose.msra.mxu0 0.0
        %544 = vmatprep.subr.mxu0 0.0
        %545 = vmatpush1.xpose.msra.mxu0 0.0
        %546 = vmatprep.subr.mxu0 0.0
        %547 = vmatpush1.xpose.msra.mxu0 0.0
        %548 = vmatprep.subr.mxu0 0.0
        %549 = vmatpush1.xpose.msra.mxu0 0.0
        %550 = vmatprep.subr.mxu0 0.0
        %551 = vmatpush1.xpose.msra.mxu0 0.0
        %552 = vmatprep.subr.mxu0 0.0
        %553 = vmatpush1.xpose.msra.mxu0 0.0
        %554 = vmatprep.subr.mxu0 0.0
        %555 = vmatpush1.xpose.msra.mxu0 0.0
        %556 = vmatprep.subr.mxu0 0.0
        %557 = vmatpush1.xpose.msra.mxu0 0.0
        %558 = vmatprep.subr.mxu0 0.0
        %559 = vmatpush1.xpose.msra.mxu0 0.0
        %560 = vmatprep.subr.mxu0 0.0
        %561 = vmatpush1.xpose.msra.mxu0 0.0
        %562 = vmatprep.subr.mxu0 0.0
        %563 = vmatpush1.xpose.msra.mxu0 0.0
        %564 = vmatprep.subr.mxu0 0.0
        %565 = vmatpush1.xpose.msra.mxu0 0.0
        %566 = vmatprep.subr.mxu0 0.0
        %567 = vmatpush1.xpose.msra.mxu0 0.0
        %568 = vmatprep.subr.mxu0 0.0
        %569 = vmatpush1.xpose.msra.mxu0 0.0
        %570 = vmatprep.subr.mxu0 0.0
        %571 = vmatpush1.xpose.msra.mxu0 0.0
        %572 = vmatprep.subr.mxu0 0.0
        %573 = vmatpush1.xpose.msra.mxu0 0.0
        %574 = vmatprep.subr.mxu0 0.0
        %575 = vmatpush1.xpose.msra.mxu0 0.0
        %576 = vmatprep.subr.mxu0 0.0
        %577 = vmatpush1.xpose.msra.mxu0 0.0
        %578 = vmatprep.subr.mxu0 0.0
        %579 = vmatpush1.xpose.msra.mxu0 0.0
        %580 = vmatprep.subr.mxu0 0.0
        %581 = vmatpush1.xpose.msra.mxu0 0.0
        %582 = vmatprep.subr.mxu0 0.0
        %583 = vmatpush1.xpose.msra.mxu0 0.0
        %584 = vmatprep.subr.mxu0 0.0
        %585 = vmatpush1.xpose.msra.mxu0 0.0
        %586 = vmatprep.subr.mxu0 0.0
        %587 = vmatpush1.xpose.msra.mxu0 0.0
        %588 = vmatprep.subr.mxu0 0.0
        %589 = vmatpush1.xpose.msra.mxu0 0.0
        %590 = vmatprep.subr.mxu0 0.0
        %591 = vmatpush1.xpose.msra.mxu0 0.0
        %592 = vmatprep.subr.mxu0 0.0
        %593 = vmatpush1.xpose.msra.mxu0 0.0
        %594 = vmatprep.subr.mxu0 0.0
        %595 = vmatpush1.xpose.msra.mxu0 0.0
        %596 = vmatprep.mubr.f32.mxu0 0.0
        %597 = vmatmul.mubr.f32.gmra.mrb[0].mxu0 %v528
        %v598 = vpop.f32.mrb[0].mxu0
        %v599 = vadd.f32 0.0, %v598
        %v600 = vpop.f32.mrb[0].mxu0
        %601 = vdwg.mxu0
        %v602 = vsel %vm527, %v505, 0
        %v604 = vsel %vm527, %v512, 0
        %606 = vmatprep.subr.mxu0 0.0
        %607 = vmatpush1.xpose.msra.mxu0 %v604
        %608 = vmatprep.subr.mxu0 0.0
        %609 = vmatpush1.xpose.msra.mxu0 0.0
        %610 = vmatprep.subr.mxu0 0.0
        %611 = vmatpush1.xpose.msra.mxu0 0.0
        %612 = vmatprep.subr.mxu0 0.0
        %613 = vmatpush1.xpose.msra.mxu0 0.0
        %614 = vmatprep.subr.mxu0 0.0
        %615 = vmatpush1.xpose.msra.mxu0 0.0
        %616 = vmatprep.subr.mxu0 0.0
        %617 = vmatpush1.xpose.msra.mxu0 0.0
        %618 = vmatprep.subr.mxu0 0.0
        %619 = vmatpush1.xpose.msra.mxu0 0.0
        %620 = vmatprep.subr.mxu0 0.0
        %621 = vmatpush1.xpose.msra.mxu0 0.0
        %622 = vmatprep.subr.mxu0 0.0
        %623 = vmatpush1.xpose.msra.mxu0 0.0
        %624 = vmatprep.subr.mxu0 0.0
        %625 = vmatpush1.xpose.msra.mxu0 0.0
        %626 = vmatprep.subr.mxu0 0.0
        %627 = vmatpush1.xpose.msra.mxu0 0.0
        %628 = vmatprep.subr.mxu0 0.0
        %629 = vmatpush1.xpose.msra.mxu0 0.0
        %630 = vmatprep.subr.mxu0 0.0
        %631 = vmatpush1.xpose.msra.mxu0 0.0
        %632 = vmatprep.subr.mxu0 0.0
        %633 = vmatpush1.xpose.msra.mxu0 0.0
        %634 = vmatprep.subr.mxu0 0.0
        %635 = vmatpush1.xpose.msra.mxu0 0.0
        %636 = vmatprep.subr.mxu0 0.0
        %637 = vmatpush1.xpose.msra.mxu0 0.0
        %638 = vmatprep.subr.mxu0 0.0
        %639 = vmatpush1.xpose.msra.mxu0 0.0
        %640 = vmatprep.subr.mxu0 0.0
        %641 = vmatpush1.xpose.msra.mxu0 0.0
        %642 = vmatprep.subr.mxu0 0.0
        %643 = vmatpush1.xpose.msra.mxu0 0.0
        %644 = vmatprep.subr.mxu0 0.0
        %645 = vmatpush1.xpose.msra.mxu0 0.0
        %646 = vmatprep.subr.mxu0 0.0
        %647 = vmatpush1.xpose.msra.mxu0 0.0
        %648 = vmatprep.subr.mxu0 0.0
        %649 = vmatpush1.xpose.msra.mxu0 0.0
        %650 = vmatprep.subr.mxu0 0.0
        %651 = vmatpush1.xpose.msra.mxu0 0.0
        %652 = vmatprep.subr.mxu0 0.0
        %653 = vmatpush1.xpose.msra.mxu0 0.0
        %654 = vmatprep.subr.mxu0 0.0
        %655 = vmatpush1.xpose.msra.mxu0 0.0
        %656 = vmatprep.subr.mxu0 0.0
        %657 = vmatpush1.xpose.msra.mxu0 0.0
        %658 = vmatprep.subr.mxu0 0.0
        %659 = vmatpush1.xpose.msra.mxu0 0.0
        %660 = vmatprep.subr.mxu0 0.0
        %661 = vmatpush1.xpose.msra.mxu0 0.0
        %662 = vmatprep.subr.mxu0 0.0
        %663 = vmatpush1.xpose.msra.mxu0 0.0
        %664 = vmatprep.subr.mxu0 0.0
        %665 = vmatpush1.xpose.msra.mxu0 0.0
        %666 = vmatprep.subr.mxu0 0.0
        %667 = vmatpush1.xpose.msra.mxu0 0.0
        %668 = vmatprep.subr.mxu0 0.0
        %669 = vmatpush1.xpose.msra.mxu0 0.0
        %670 = vmatprep.mubr.f32.mxu0 0.0
        %671 = vmatmul.mubr.f32.gmra.mrb[0].mxu0 %v602
        %v672 = vpop.f32.mrb[0].mxu0
        %v673 = vadd.f32 0.0, %v672
        %v674 = vpop.f32.mrb[0].mxu0
        %675 = vdwg.mxu0
        %v676 = vsel %vm527, %v507, 0
        %v678 = vsel %vm527, %v514, 0
        %680 = vmatprep.subr.mxu0 0.0
        %681 = vmatpush1.xpose.msra.mxu0 %v678
        %682 = vmatprep.subr.mxu0 0.0
        %683 = vmatpush1.xpose.msra.mxu0 0.0
        %684 = vmatprep.subr.mxu0 0.0
        %685 = vmatpush1.xpose.msra.mxu0 0.0
        %686 = vmatprep.subr.mxu0 0.0
        %687 = vmatpush1.xpose.msra.mxu0 0.0
        %688 = vmatprep.subr.mxu0 0.0
        %689 = vmatpush1.xpose.msra.mxu0 0.0
        %690 = vmatprep.subr.mxu0 0.0
        %691 = vmatpush1.xpose.msra.mxu0 0.0
        %692 = vmatprep.subr.mxu0 0.0
        %693 = vmatpush1.xpose.msra.mxu0 0.0
        %694 = vmatprep.subr.mxu0 0.0
        %695 = vmatpush1.xpose.msra.mxu0 0.0
        %696 = vmatprep.subr.mxu0 0.0
        %697 = vmatpush1.xpose.msra.mxu0 0.0
        %698 = vmatprep.subr.mxu0 0.0
        %699 = vmatpush1.xpose.msra.mxu0 0.0
        %700 = vmatprep.subr.mxu0 0.0
        %701 = vmatpush1.xpose.msra.mxu0 0.0
        %702 = vmatprep.subr.mxu0 0.0
        %703 = vmatpush1.xpose.msra.mxu0 0.0
        %704 = vmatprep.subr.mxu0 0.0
        %705 = vmatpush1.xpose.msra.mxu0 0.0
        %706 = vmatprep.subr.mxu0 0.0
        %707 = vmatpush1.xpose.msra.mxu0 0.0
        %708 = vmatprep.subr.mxu0 0.0
        %709 = vmatpush1.xpose.msra.mxu0 0.0
        %710 = vmatprep.subr.mxu0 0.0
        %711 = vmatpush1.xpose.msra.mxu0 0.0
        %712 = vmatprep.subr.mxu0 0.0
        %713 = vmatpush1.xpose.msra.mxu0 0.0
        %714 = vmatprep.subr.mxu0 0.0
        %715 = vmatpush1.xpose.msra.mxu0 0.0
        %716 = vmatprep.subr.mxu0 0.0
        %717 = vmatpush1.xpose.msra.mxu0 0.0
        %718 = vmatprep.subr.mxu0 0.0
        %719 = vmatpush1.xpose.msra.mxu0 0.0
        %720 = vmatprep.subr.mxu0 0.0
        %721 = vmatpush1.xpose.msra.mxu0 0.0
        %722 = vmatprep.subr.mxu0 0.0
        %723 = vmatpush1.xpose.msra.mxu0 0.0
        %724 = vmatprep.subr.mxu0 0.0
        %725 = vmatpush1.xpose.msra.mxu0 0.0
        %726 = vmatprep.subr.mxu0 0.0
        %727 = vmatpush1.xpose.msra.mxu0 0.0
        %728 = vmatprep.subr.mxu0 0.0
        %729 = vmatpush1.xpose.msra.mxu0 0.0
        %730 = vmatprep.subr.mxu0 0.0
        %731 = vmatpush1.xpose.msra.mxu0 0.0
        %732 = vmatprep.subr.mxu0 0.0
        %733 = vmatpush1.xpose.msra.mxu0 0.0
        %734 = vmatprep.subr.mxu0 0.0
        %735 = vmatpush1.xpose.msra.mxu0 0.0
        %736 = vmatprep.subr.mxu0 0.0
        %737 = vmatpush1.xpose.msra.mxu0 0.0
        %738 = vmatprep.subr.mxu0 0.0
        %739 = vmatpush1.xpose.msra.mxu0 0.0
        %740 = vmatprep.subr.mxu0 0.0
        %741 = vmatpush1.xpose.msra.mxu0 0.0
        %742 = vmatprep.subr.mxu0 0.0
        %743 = vmatpush1.xpose.msra.mxu0 0.0
        %744 = vmatprep.mubr.f32.mxu0 0.0
        %745 = vmatmul.mubr.f32.gmra.mrb[0].mxu0 %v676
        %v746 = vpop.f32.mrb[0].mxu0
        %v747 = vadd.f32 0.0, %v746
        %v748 = vpop.f32.mrb[0].mxu0
        %749 = vdwg.mxu0
        %v750 = vsel %vm527, %v509, 0
        %v752 = vsel %vm527, %v516, 0
        %754 = vmatprep.subr.mxu0 0.0
        %755 = vmatpush1.xpose.msra.mxu0 %v752
        %756 = vmatprep.subr.mxu0 0.0
        %757 = vmatpush1.xpose.msra.mxu0 0.0
        %758 = vmatprep.subr.mxu0 0.0
        %759 = vmatpush1.xpose.msra.mxu0 0.0
        %760 = vmatprep.subr.mxu0 0.0
        %761 = vmatpush1.xpose.msra.mxu0 0.0
        %762 = vmatprep.subr.mxu0 0.0
        %763 = vmatpush1.xpose.msra.mxu0 0.0
        %764 = vmatprep.subr.mxu0 0.0
        %765 = vmatpush1.xpose.msra.mxu0 0.0
        %766 = vmatprep.subr.mxu0 0.0
        %767 = vmatpush1.xpose.msra.mxu0 0.0
        %768 = vmatprep.subr.mxu0 0.0
        %769 = vmatpush1.xpose.msra.mxu0 0.0
        %770 = vmatprep.subr.mxu0 0.0
        %771 = vmatpush1.xpose.msra.mxu0 0.0
        %772 = vmatprep.subr.mxu0 0.0
        %773 = vmatpush1.xpose.msra.mxu0 0.0
        %774 = vmatprep.subr.mxu0 0.0
        %775 = vmatpush1.xpose.msra.mxu0 0.0
        %776 = vmatprep.subr.mxu0 0.0
        %777 = vmatpush1.xpose.msra.mxu0 0.0
        %778 = vmatprep.subr.mxu0 0.0
        %779 = vmatpush1.xpose.msra.mxu0 0.0
        %780 = vmatprep.subr.mxu0 0.0
        %781 = vmatpush1.xpose.msra.mxu0 0.0
        %782 = vmatprep.subr.mxu0 0.0
        %783 = vmatpush1.xpose.msra.mxu0 0.0
        %784 = vmatprep.subr.mxu0 0.0
        %785 = vmatpush1.xpose.msra.mxu0 0.0
        %786 = vmatprep.subr.mxu0 0.0
        %787 = vmatpush1.xpose.msra.mxu0 0.0
        %788 = vmatprep.subr.mxu0 0.0
        %789 = vmatpush1.xpose.msra.mxu0 0.0
        %790 = vmatprep.subr.mxu0 0.0
        %791 = vmatpush1.xpose.msra.mxu0 0.0
        %792 = vmatprep.subr.mxu0 0.0
        %793 = vmatpush1.xpose.msra.mxu0 0.0
        %794 = vmatprep.subr.mxu0 0.0
        %795 = vmatpush1.xpose.msra.mxu0 0.0
        %796 = vmatprep.subr.mxu0 0.0
        %797 = vmatpush1.xpose.msra.mxu0 0.0
        %798 = vmatprep.subr.mxu0 0.0
        %799 = vmatpush1.xpose.msra.mxu0 0.0
        %800 = vmatprep.subr.mxu0 0.0
        %801 = vmatpush1.xpose.msra.mxu0 0.0
        %802 = vmatprep.subr.mxu0 0.0
        %803 = vmatpush1.xpose.msra.mxu0 0.0
        %804 = vmatprep.subr.mxu0 0.0
        %805 = vmatpush1.xpose.msra.mxu0 0.0
        %806 = vmatprep.subr.mxu0 0.0
        %807 = vmatpush1.xpose.msra.mxu0 0.0
        %808 = vmatprep.subr.mxu0 0.0
        %809 = vmatpush1.xpose.msra.mxu0 0.0
        %810 = vmatprep.subr.mxu0 0.0
        %811 = vmatpush1.xpose.msra.mxu0 0.0
        %812 = vmatprep.subr.mxu0 0.0
        %813 = vmatpush1.xpose.msra.mxu0 0.0
        %814 = vmatprep.subr.mxu0 0.0
        %815 = vmatpush1.xpose.msra.mxu0 0.0
        %816 = vmatprep.subr.mxu0 0.0
        %817 = vmatpush1.xpose.msra.mxu0 0.0
        %818 = vmatprep.mubr.f32.mxu0 0.0
        %819 = vmatmul.mubr.f32.gmra.mrb[0].mxu0 %v750
        %v820 = vpop.f32.mrb[0].mxu0
        %v821 = vadd.f32 0.0, %v820
        %v822 = vpop.f32.mrb[0].mxu0
        %823 = vdwg.mxu0
        %v824 = vld [vmem:[%s246] sm:$0xf]
        %v825 = vunpack.c.l.bf16 %v824
        %v826 = vadd.f32 %v599, %v825
        %v827 = vadd.f32 %v673, %v825
        %v828 = vadd.f32 %v747, %v825
        %v829 = vadd.f32 %v821, %v825
        %v830 = vsel %vm527, %v826, -inf
        %831 = vmax.xlane.f32.xlu0 %v830
        %v832 = vpop.xlane.xlu0 %831
        %v833 = vsel %vm527, %v827, -inf
        %834 = vmax.xlane.f32.xlu0 %v833
        %v835 = vpop.xlane.xlu0 %834
        %v836 = vsel %vm527, %v828, -inf
        %837 = vmax.xlane.f32.xlu0 %v836
        %v838 = vpop.xlane.xlu0 %837
        %v839 = vsel %vm527, %v829, -inf
        %840 = vmax.xlane.f32.xlu0 %v839
        %v841 = vpop.xlane.xlu0 %840
        %v842 = vsub.f32 %v826, %v832
        %v843 = vsub.f32 %v827, %v835
        %v844 = vsub.f32 %v828, %v838
        %v845 = vsub.f32 %v829, %v841
        %v846 = vmul.f32 %v842, 1.442695
        %v847 = vpow.pop %v846
        %v848 = vmul.f32 %v843, 1.442695
        %v849 = vpow.pop %v848
        %v850 = vmul.f32 %v844, 1.442695
        %v851 = vpow.pop %v850
        %v852 = vmul.f32 %v845, 1.442695
        %v853 = vpow.pop %v852
        %v854 = vsel %vm527, %v847, 0.0
        %855 = vadd.xlane.f32.xlu0 %v854
        %v856 = vpop.xlane.xlu0 %855
        %v857 = vsel %vm527, %v849, 0.0
        %858 = vadd.xlane.f32.xlu0 %v857
        %v859 = vpop.xlane.xlu0 %858
        %v860 = vsel %vm527, %v851, 0.0
        %861 = vadd.xlane.f32.xlu0 %v860
        %v862 = vpop.xlane.xlu0 %861
        %v863 = vsel %vm527, %v853, 0.0
        %864 = vadd.xlane.f32.xlu0 %v863
        %v865 = vpop.xlane.xlu0 %864
        %v866 = vrcp.pop %v856
        %v867 = vrcp.pop %v859
        %v868 = vrcp.pop %v862
        %v869 = vrcp.pop %v865
        %v870 = vmul.f32 %v847, %v866
        %v871 = vmul.f32 %v849, %v867
        %v872 = vmul.f32 %v851, %v868
        %v873 = vmul.f32 %v853, %v869
        %v875 = vsel %vm527, %v870, 0
        %877 = vmatprep.subr.mxu0 0.0
        %878 = vmatpush1.msra.mxu0 %v500
        %879 = vmatprep.subr.mxu0 0.0
        %880 = vmatpush1.msra.mxu0 0.0
        %881 = vmatprep.subr.mxu0 0.0
        %882 = vmatpush1.msra.mxu0 0.0
        %883 = vmatprep.subr.mxu0 0.0
        %884 = vmatpush1.msra.mxu0 0.0
        %885 = vmatprep.subr.mxu0 0.0
        %886 = vmatpush1.msra.mxu0 0.0
        %887 = vmatprep.subr.mxu0 0.0
        %888 = vmatpush1.msra.mxu0 0.0
        %889 = vmatprep.subr.mxu0 0.0
        %890 = vmatpush1.msra.mxu0 0.0
        %891 = vmatprep.subr.mxu0 0.0
        %892 = vmatpush1.msra.mxu0 0.0
        %893 = vmatprep.subr.mxu0 0.0
        %894 = vmatpush1.msra.mxu0 0.0
        %895 = vmatprep.subr.mxu0 0.0
        %896 = vmatpush1.msra.mxu0 0.0
        %897 = vmatprep.subr.mxu0 0.0
        %898 = vmatpush1.msra.mxu0 0.0
        %899 = vmatprep.subr.mxu0 0.0
        %900 = vmatpush1.msra.mxu0 0.0
        %901 = vmatprep.subr.mxu0 0.0
        %902 = vmatpush1.msra.mxu0 0.0
        %903 = vmatprep.subr.mxu0 0.0
        %904 = vmatpush1.msra.mxu0 0.0
        %905 = vmatprep.subr.mxu0 0.0
        %906 = vmatpush1.msra.mxu0 0.0
        %907 = vmatprep.subr.mxu0 0.0
        %908 = vmatpush1.msra.mxu0 0.0
        %909 = vmatprep.subr.mxu0 0.0
        %910 = vmatpush1.msra.mxu0 0.0
        %911 = vmatprep.subr.mxu0 0.0
        %912 = vmatpush1.msra.mxu0 0.0
        %913 = vmatprep.subr.mxu0 0.0
        %914 = vmatpush1.msra.mxu0 0.0
        %915 = vmatprep.subr.mxu0 0.0
        %916 = vmatpush1.msra.mxu0 0.0
        %917 = vmatprep.subr.mxu0 0.0
        %918 = vmatpush1.msra.mxu0 0.0
        %919 = vmatprep.subr.mxu0 0.0
        %920 = vmatpush1.msra.mxu0 0.0
        %921 = vmatprep.subr.mxu0 0.0
        %922 = vmatpush1.msra.mxu0 0.0
        %923 = vmatprep.subr.mxu0 0.0
        %924 = vmatpush1.msra.mxu0 0.0
        %925 = vmatprep.subr.mxu0 0.0
        %926 = vmatpush1.msra.mxu0 0.0
        %927 = vmatprep.subr.mxu0 0.0
        %928 = vmatpush1.msra.mxu0 0.0
        %929 = vmatprep.subr.mxu0 0.0
        %930 = vmatpush1.msra.mxu0 0.0
        %931 = vmatprep.subr.mxu0 0.0
        %932 = vmatpush1.msra.mxu0 0.0
        %933 = vmatprep.subr.mxu0 0.0
        %934 = vmatpush1.msra.mxu0 0.0
        %935 = vmatprep.subr.mxu0 0.0
        %936 = vmatpush1.msra.mxu0 0.0
        %937 = vmatprep.subr.mxu0 0.0
        %938 = vmatpush1.msra.mxu0 0.0
        %939 = vmatprep.subr.mxu0 0.0
        %940 = vmatpush1.msra.mxu0 0.0
        %941 = vmatprep.mubr.f32.mxu0 0.0
        %942 = vmatmul.mubr.f32.gmra.mrb[0].mxu0 %v875
        %v943 = vpop.f32.mrb[0].mxu0
        %v944 = vadd.f32 0.0, %v943
        %v945 = vpop.f32.mrb[0].mxu0
        %946 = vdwg.mxu0
        %v948 = vsel %vm527, %v871, 0
        %950 = vmatprep.subr.mxu0 0.0
        %951 = vmatpush1.msra.mxu0 %v519
        %952 = vmatprep.subr.mxu0 0.0
        %953 = vmatpush1.msra.mxu0 0.0
        %954 = vmatprep.subr.mxu0 0.0
        %955 = vmatpush1.msra.mxu0 0.0
        %956 = vmatprep.subr.mxu0 0.0
        %957 = vmatpush1.msra.mxu0 0.0
        %958 = vmatprep.subr.mxu0 0.0
        %959 = vmatpush1.msra.mxu0 0.0
        %960 = vmatprep.subr.mxu0 0.0
        %961 = vmatpush1.msra.mxu0 0.0
        %962 = vmatprep.subr.mxu0 0.0
        %963 = vmatpush1.msra.mxu0 0.0
        %964 = vmatprep.subr.mxu0 0.0
        %965 = vmatpush1.msra.mxu0 0.0
        %966 = vmatprep.subr.mxu0 0.0
        %967 = vmatpush1.msra.mxu0 0.0
        %968 = vmatprep.subr.mxu0 0.0
        %969 = vmatpush1.msra.mxu0 0.0
        %970 = vmatprep.subr.mxu0 0.0
        %971 = vmatpush1.msra.mxu0 0.0
        %972 = vmatprep.subr.mxu0 0.0
        %973 = vmatpush1.msra.mxu0 0.0
        %974 = vmatprep.subr.mxu0 0.0
        %975 = vmatpush1.msra.mxu0 0.0
        %976 = vmatprep.subr.mxu0 0.0
        %977 = vmatpush1.msra.mxu0 0.0
        %978 = vmatprep.subr.mxu0 0.0
        %979 = vmatpush1.msra.mxu0 0.0
        %980 = vmatprep.subr.mxu0 0.0
        %981 = vmatpush1.msra.mxu0 0.0
        %982 = vmatprep.subr.mxu0 0.0
        %983 = vmatpush1.msra.mxu0 0.0
        %984 = vmatprep.subr.mxu0 0.0
        %985 = vmatpush1.msra.mxu0 0.0
        %986 = vmatprep.subr.mxu0 0.0
        %987 = vmatpush1.msra.mxu0 0.0
        %988 = vmatprep.subr.mxu0 0.0
        %989 = vmatpush1.msra.mxu0 0.0
        %990 = vmatprep.subr.mxu0 0.0
        %991 = vmatpush1.msra.mxu0 0.0
        %992 = vmatprep.subr.mxu0 0.0
        %993 = vmatpush1.msra.mxu0 0.0
        %994 = vmatprep.subr.mxu0 0.0
        %995 = vmatpush1.msra.mxu0 0.0
        %996 = vmatprep.subr.mxu0 0.0
        %997 = vmatpush1.msra.mxu0 0.0
        %998 = vmatprep.subr.mxu0 0.0
        %999 = vmatpush1.msra.mxu0 0.0
        %1000 = vmatprep.subr.mxu0 0.0
        %1001 = vmatpush1.msra.mxu0 0.0
        %1002 = vmatprep.subr.mxu0 0.0
        %1003 = vmatpush1.msra.mxu0 0.0
        %1004 = vmatprep.subr.mxu0 0.0
        %1005 = vmatpush1.msra.mxu0 0.0
        %1006 = vmatprep.subr.mxu0 0.0
        %1007 = vmatpush1.msra.mxu0 0.0
        %1008 = vmatprep.subr.mxu0 0.0
        %1009 = vmatpush1.msra.mxu0 0.0
        %1010 = vmatprep.subr.mxu0 0.0
        %1011 = vmatpush1.msra.mxu0 0.0
        %1012 = vmatprep.subr.mxu0 0.0
        %1013 = vmatpush1.msra.mxu0 0.0
        %1014 = vmatprep.mubr.f32.mxu0 0.0
        %1015 = vmatmul.mubr.f32.gmra.mrb[0].mxu0 %v948
        %v1016 = vpop.f32.mrb[0].mxu0
        %v1017 = vadd.f32 0.0, %v1016
        %v1018 = vpop.f32.mrb[0].mxu0
        %1019 = vdwg.mxu0
        %v1021 = vsel %vm527, %v872, 0
        %1023 = vmatprep.subr.mxu0 0.0
        %1024 = vmatpush1.msra.mxu0 %v522
        %1025 = vmatprep.subr.mxu0 0.0
        %1026 = vmatpush1.msra.mxu0 0.0
        %1027 = vmatprep.subr.mxu0 0.0
        %1028 = vmatpush1.msra.mxu0 0.0
        %1029 = vmatprep.subr.mxu0 0.0
        %1030 = vmatpush1.msra.mxu0 0.0
        %1031 = vmatprep.subr.mxu0 0.0
        %1032 = vmatpush1.msra.mxu0 0.0
        %1033 = vmatprep.subr.mxu0 0.0
        %1034 = vmatpush1.msra.mxu0 0.0
        %1035 = vmatprep.subr.mxu0 0.0
        %1036 = vmatpush1.msra.mxu0 0.0
        %1037 = vmatprep.subr.mxu0 0.0
        %1038 = vmatpush1.msra.mxu0 0.0
        %1039 = vmatprep.subr.mxu0 0.0
        %1040 = vmatpush1.msra.mxu0 0.0
        %1041 = vmatprep.subr.mxu0 0.0
        %1042 = vmatpush1.msra.mxu0 0.0
        %1043 = vmatprep.subr.mxu0 0.0
        %1044 = vmatpush1.msra.mxu0 0.0
        %1045 = vmatprep.subr.mxu0 0.0
        %1046 = vmatpush1.msra.mxu0 0.0
        %1047 = vmatprep.subr.mxu0 0.0
        %1048 = vmatpush1.msra.mxu0 0.0
        %1049 = vmatprep.subr.mxu0 0.0
        %1050 = vmatpush1.msra.mxu0 0.0
        %1051 = vmatprep.subr.mxu0 0.0
        %1052 = vmatpush1.msra.mxu0 0.0
        %1053 = vmatprep.subr.mxu0 0.0
        %1054 = vmatpush1.msra.mxu0 0.0
        %1055 = vmatprep.subr.mxu0 0.0
        %1056 = vmatpush1.msra.mxu0 0.0
        %1057 = vmatprep.subr.mxu0 0.0
        %1058 = vmatpush1.msra.mxu0 0.0
        %1059 = vmatprep.subr.mxu0 0.0
        %1060 = vmatpush1.msra.mxu0 0.0
        %1061 = vmatprep.subr.mxu0 0.0
        %1062 = vmatpush1.msra.mxu0 0.0
        %1063 = vmatprep.subr.mxu0 0.0
        %1064 = vmatpush1.msra.mxu0 0.0
        %1065 = vmatprep.subr.mxu0 0.0
        %1066 = vmatpush1.msra.mxu0 0.0
        %1067 = vmatprep.subr.mxu0 0.0
        %1068 = vmatpush1.msra.mxu0 0.0
        %1069 = vmatprep.subr.mxu0 0.0
        %1070 = vmatpush1.msra.mxu0 0.0
        %1071 = vmatprep.subr.mxu0 0.0
        %1072 = vmatpush1.msra.mxu0 0.0
        %1073 = vmatprep.subr.mxu0 0.0
        %1074 = vmatpush1.msra.mxu0 0.0
        %1075 = vmatprep.subr.mxu0 0.0
        %1076 = vmatpush1.msra.mxu0 0.0
        %1077 = vmatprep.subr.mxu0 0.0
        %1078 = vmatpush1.msra.mxu0 0.0
        %1079 = vmatprep.subr.mxu0 0.0
        %1080 = vmatpush1.msra.mxu0 0.0
        %1081 = vmatprep.subr.mxu0 0.0
        %1082 = vmatpush1.msra.mxu0 0.0
        %1083 = vmatprep.subr.mxu0 0.0
        %1084 = vmatpush1.msra.mxu0 0.0
        %1085 = vmatprep.subr.mxu0 0.0
        %1086 = vmatpush1.msra.mxu0 0.0
        %1087 = vmatprep.mubr.f32.mxu0 0.0
        %1088 = vmatmul.mubr.f32.gmra.mrb[0].mxu0 %v1021
        %v1089 = vpop.f32.mrb[0].mxu0
        %v1090 = vadd.f32 0.0, %v1089
        %v1091 = vpop.f32.mrb[0].mxu0
        %1092 = vdwg.mxu0
        %v1094 = vsel %vm527, %v873, 0
        %1096 = vmatprep.subr.mxu0 0.0
        %1097 = vmatpush1.msra.mxu0 %v525
        %1098 = vmatprep.subr.mxu0 0.0
        %1099 = vmatpush1.msra.mxu0 0.0
        %1100 = vmatprep.subr.mxu0 0.0
        %1101 = vmatpush1.msra.mxu0 0.0
        %1102 = vmatprep.subr.mxu0 0.0
        %1103 = vmatpush1.msra.mxu0 0.0
        %1104 = vmatprep.subr.mxu0 0.0
        %1105 = vmatpush1.msra.mxu0 0.0
        %1106 = vmatprep.subr.mxu0 0.0
        %1107 = vmatpush1.msra.mxu0 0.0
        %1108 = vmatprep.subr.mxu0 0.0
        %1109 = vmatpush1.msra.mxu0 0.0
        %1110 = vmatprep.subr.mxu0 0.0
        %1111 = vmatpush1.msra.mxu0 0.0
        %1112 = vmatprep.subr.mxu0 0.0
        %1113 = vmatpush1.msra.mxu0 0.0
        %1114 = vmatprep.subr.mxu0 0.0
        %1115 = vmatpush1.msra.mxu0 0.0
        %1116 = vmatprep.subr.mxu0 0.0
        %1117 = vmatpush1.msra.mxu0 0.0
        %1118 = vmatprep.subr.mxu0 0.0
        %1119 = vmatpush1.msra.mxu0 0.0
        %1120 = vmatprep.subr.mxu0 0.0
        %1121 = vmatpush1.msra.mxu0 0.0
        %1122 = vmatprep.subr.mxu0 0.0
        %1123 = vmatpush1.msra.mxu0 0.0
        %1124 = vmatprep.subr.mxu0 0.0
        %1125 = vmatpush1.msra.mxu0 0.0
        %1126 = vmatprep.subr.mxu0 0.0
        %1127 = vmatpush1.msra.mxu0 0.0
        %1128 = vmatprep.subr.mxu0 0.0
        %1129 = vmatpush1.msra.mxu0 0.0
        %1130 = vmatprep.subr.mxu0 0.0
        %1131 = vmatpush1.msra.mxu0 0.0
        %1132 = vmatprep.subr.mxu0 0.0
        %1133 = vmatpush1.msra.mxu0 0.0
        %1134 = vmatprep.subr.mxu0 0.0
        %1135 = vmatpush1.msra.mxu0 0.0
        %1136 = vmatprep.subr.mxu0 0.0
        %1137 = vmatpush1.msra.mxu0 0.0
        %1138 = vmatprep.subr.mxu0 0.0
        %1139 = vmatpush1.msra.mxu0 0.0
        %1140 = vmatprep.subr.mxu0 0.0
        %1141 = vmatpush1.msra.mxu0 0.0
        %1142 = vmatprep.subr.mxu0 0.0
        %1143 = vmatpush1.msra.mxu0 0.0
        %1144 = vmatprep.subr.mxu0 0.0
        %1145 = vmatpush1.msra.mxu0 0.0
        %1146 = vmatprep.subr.mxu0 0.0
        %1147 = vmatpush1.msra.mxu0 0.0
        %1148 = vmatprep.subr.mxu0 0.0
        %1149 = vmatpush1.msra.mxu0 0.0
        %1150 = vmatprep.subr.mxu0 0.0
        %1151 = vmatpush1.msra.mxu0 0.0
        %1152 = vmatprep.subr.mxu0 0.0
        %1153 = vmatpush1.msra.mxu0 0.0
        %1154 = vmatprep.subr.mxu0 0.0
        %1155 = vmatpush1.msra.mxu0 0.0
        %1156 = vmatprep.subr.mxu0 0.0
        %1157 = vmatpush1.msra.mxu0 0.0
        %1158 = vmatprep.subr.mxu0 0.0
        %1159 = vmatpush1.msra.mxu0 0.0
        %1160 = vmatprep.mubr.f32.mxu0 0.0
        %1161 = vmatmul.mubr.f32.gmra.mrb[0].mxu0 %v1094
        %v1162 = vpop.f32.mrb[0].mxu0
        %v1163 = vadd.f32 0.0, %v1162
        %v1164 = vpop.f32.mrb[0].mxu0
        %1165 = vdwg.mxu0
        %1167 = vrot.lane.b32.xlu0 %v1017, 8
        %v1168 = vpop.permute.xlu0 %1167
        %1171 = vrot.lane.b32.xlu0 %v1090, 16
        %v1172 = vpop.permute.xlu0 %1171
        %1175 = vrot.lane.b32.xlu0 %v1163, 24
        %v1176 = vpop.permute.xlu0 %1175
        %v1178 = vsel %vm527, %v944, %v1168
        %vm1179 = vcmask 130048
        %v1180 = vsel %vm1179, %v1178, %v1172
        %vm1181 = vcmask 195584
        %v1182 = vsel %vm1181, %v1180, %v1176
        %1183 = vst.msk [vmem:[%s242] sm:$0xff] %vm283, %v1182
        %s1184 = sand.u32 %s124, 1
        %s1185 = scalar_lea.sflag [#allocation4], %s1184
        %s1186 = sand.u32 %s124, 1
        %s1187 = smul.addr %s1186, 8
        %s1188 = scalar_lea.vmem [#allocation7], %s1187
        // Predicated region
        $region45: #{tpu_custom_call.1} parent=35 // pred_check
          %p1189 = pneg %p134
        $region46: #{tpu_custom_call.1} parent=35 // pred_check_branch
          %1191 = sbr.rel (%p1189) target = $region48
        $region47: #{tpu_custom_call.1} parent=35 // pred_region
          %s1193 = ssub.s32 128, 128
          %1194 = vsyncadd %s1185, %s1193
          %s1195 = smul.addr %s22, 128
          %s1196 = scalar_lea.hbm %s4, %s1195
          %s1198 = sshll.u32 %s1188, 4
          %s1199 = int_to_ptr.vmem [resolvable:$true] %s1198
          %1201 = dma.vmem_to_hbm [thread:$0]  %s1199, 128, %s1196, %s1185
        $region48: #{tpu_custom_call.1} parent=35 // pred_fallthru
          _
      $region36: #{tpu_custom_call.1} parent=5 // pred_fallthru
        _
      %p1202 = scmp.le.s32.totalorder 2, %s17
      // Predicated region
      $region49: #{tpu_custom_call.1} parent=5 // pred_check
        %p1203 = pneg %p1202
      $region50: #{tpu_custom_call.1} parent=5 // pred_check_branch
        %1205 = sbr.rel (%p1203) target = $region52
      $region51: #{tpu_custom_call.1} parent=5 // pred_region
        %s1206 = ssub.s32 %s17, 2
        // Predicated region
        $region53: #{tpu_custom_call.1} parent=51 // pred_check
          %p1207 = pneg %p140
        $region54: #{tpu_custom_call.1} parent=51 // pred_check_branch
          %1209 = sbr.rel (%p1207) target = $region56
        $region55: #{tpu_custom_call.1} parent=51 // pred_region
          %s1210 = sand.u32 %s125, 1
          %s1211 = scalar_lea.sflag [#allocation4], %s1210
          %s1212 = sand.u32 %s125, 1
          %s1213 = smul.addr %s1212, 8
          %s1214 = scalar_lea.vmem [#allocation7], %s1213
          %1215 = dma.done %s1211, 128
        $region56: #{tpu_custom_call.1} parent=51 // pred_fallthru
          _
      $region52: #{tpu_custom_call.1} parent=5 // pred_fallthru
        _
    $region6: #{tpu_custom_call.1} parent=1 // loop_footer
      %s21 = sadd.s32 1, %s17
    $region7: #{tpu_custom_call.1} parent=1 // loop_footer_branch
      %16 = sbr.rel target = $region3
    $region8: #{tpu_custom_call.1} parent=1 // loop_exit
      _
    %1216 = vsyncpa [#allocation3], 1
    %s1217 = scalar_lea.sflag [#allocation3], 1
    %1218 = vsyncpa %s1217, 1
    %1219 = vsyncpa [#allocation6], 1
    %1220 = vsyncpa [#allocation4], 1
    %s1221 = scalar_lea.sflag [#allocation4], 1
    %1222 = vsyncpa %s1221, 1

</llo_original>
